<compile_context>
chip_gen: v6e
topology: v6e:2x2x1
jax: 0.10.0
libtpu: 0.0.40
codegen_flags: <defaults>
</compile_context>

<pallas_src>
import functools

import jax
import jax.numpy as jnp
from jax import lax
from jax.experimental import pallas as pl
from jax.experimental.pallas import tpu as pltpu


GAMMA = 0.5            # fixed in the PyTorch module __init__
_PAD_SENTINEL = 1.0e4  # exp(-sentinel) underflows to exactly 0 in f32


def _round_up(x, m):
    return ((x + m - 1) // m) * m


def _choose_tile_m(m):
    m16 = _round_up(m, 16)          # bf16 sublane packing wants multiples of 16
    return m16 if m16 <= 256 else 256


def _vmem_limit(*block_nbytes):
    # Rough per-step footprint: double-buffer every block + headroom.
    est = 2 * sum(int(b) for b in block_nbytes) + (4 << 20)
    if est <= (24 << 20):
        return None                  # default scoped limit is plenty
    return min(est, 96 << 20)


def _scores_kernel(af_ref, ae_ref, r2_ref, bf_ref, be_ref, s2_ref,
                   scores_ref, colsum_ref):
    """Pass 1: unnormalized scores tile + per-tile partial column sums."""
    f32 = jnp.float32
    # Two MXU passes, bf16 operands, f32 accumulation, contracting dim 1 of
    # both operands -> no in-kernel transposes.
    xy1 = lax.dot_general(af_ref[...], bf_ref[...],
                          dimension_numbers=(((1,), (1,)), ((), ())),
                          preferred_element_type=f32)     # (tm, N_pad)
    xy2 = lax.dot_general(ae_ref[...], be_ref[...],
                          dimension_numbers=(((1,), (1,)), ((), ())),
                          preferred_element_type=f32)     # (tm, N_pad)

    # Constants already folded in the wrapper:
    #   0.5*ms1 = max(1 - xy1, 0)
    #   0.5*ms2 = max(0.05*r2 + 0.05*s2 - 0.1*xy2, 0)   (0.1 folded into src_equ)
    # Padded rows/cols carry a 1e4 sentinel in r2'/s2' -> exp underflows to 0.
    ms = jnp.maximum(1.0 - xy1, 0.0) + \
         jnp.maximum((r2_ref[...] + s2_ref[...]) - xy2, 0.0)
    scores = jnp.exp(-ms)

    scores_ref[...] = scores.astype(scores_ref.dtype)
    colsum_ref[0] = jnp.sum(scores, axis=0, keepdims=True)   # (1, N_pad)


def _dual_norm_kernel(scores_ref, inv_col_ref, out_ref):
    """Pass 2: scores^2 * inv_row * inv_col (row sums are tile-local)."""
    s = scores_ref[...].astype(jnp.float32)
    row_sum = jnp.sum(s, axis=1, keepdims=True)                       # (tm, 1)
    inv_row = pl.reciprocal(jnp.where(row_sum > 0.0, row_sum, 1.0), approx=True)
    out_ref[...] = ((s * s) * inv_row * inv_col_ref[...]).astype(out_ref.dtype)


def compute_matching_scores(ref_feats, src_feats, ref_equ, src_equ,
                            dual_normalization=True, out_dtype=jnp.float32):
    """Returns the padded (M_pad, N_pad) score matrix.

    Padded rows/cols are exactly 0; the valid (M, N) region matches the
    PyTorch module's matching_scores.
    """
    M, C = ref_feats.shape
    N, _ = src_feats.shape
    E = ref_equ.shape[-1]

    tile_m = _choose_tile_m(M)
    M_pad = _round_up(M, tile_m)
    N_pad = _round_up(N, 128)
    C_pad = _round_up(C, 128)
    E_pad = _round_up(E, 128)
    num_tiles = M_pad // tile_m

    f32 = jnp.float32
    bf16 = jnp.bfloat16

    # Folded constants (gamma=0.5, equ weight 0.1) + sentinel padding.
    r2 = 0.05 * jnp.sum(ref_equ.astype(f32) ** 2, axis=-1, keepdims=True)  # (M,1)
    s2 = 0.05 * jnp.sum(src_equ.astype(f32) ** 2, axis=-1)[None, :]        # (1,N)
    r2 = jnp.pad(r2, ((0, M_pad - M), (0, 0)), constant_values=_PAD_SENTINEL)
    s2 = jnp.pad(s2, ((0, 0), (0, N_pad - N)), constant_values=_PAD_SENTINEL)

    a_feat = jnp.pad(ref_feats.astype(bf16), ((0, M_pad - M), (0, C_pad - C)))
    a_equ = jnp.pad(ref_equ.astype(bf16), ((0, M_pad - M), (0, E_pad - E)))
    b_feat = jnp.pad(src_feats.astype(bf16), ((0, N_pad - N), (0, C_pad - C)))
    # 0.1 equ weight folded into the RHS before the bf16 cast.
    b_equ = jnp.pad((0.1 * src_equ).astype(bf16), ((0, N_pad - N), (0, E_pad - E)))

    grid = (num_tiles,)
    pass1_dtype = f32 if dual_normalization else out_dtype

    vmem1 = _vmem_limit(
        tile_m * C_pad * 2, tile_m * E_pad * 2, tile_m * 4,
        N_pad * C_pad * 2, N_pad * E_pad * 2, N_pad * 4,
        tile_m * N_pad * 4, N_pad * 4,
        3 * tile_m * N_pad * 4)  # xy1/xy2/ms f32 temporaries

    p1_cost = pl.CostEstimate(
        flops=2 * M_pad * N_pad * (C_pad + E_pad),
        transcendentals=M_pad * N_pad,
        bytes_accessed=(M_pad * (C_pad + E_pad) * 2
                        + N_pad * (C_pad + E_pad) * 2
                        + M_pad * 4 + N_pad * 4
                        + M_pad * N_pad * 4 + num_tiles * N_pad * 4))

    scores_u, col_part = pl.pallas_call(
        _scores_kernel,
        out_shape=(jax.ShapeDtypeStruct((M_pad, N_pad), pass1_dtype),
                   jax.ShapeDtypeStruct((num_tiles, 1, N_pad), f32)),
        grid=grid,
        in_specs=[
            pl.BlockSpec((tile_m, C_pad), lambda i: (i, 0)),   # ref feats tile
            pl.BlockSpec((tile_m, E_pad), lambda i: (i, 0)),   # ref equ tile
            pl.BlockSpec((tile_m, 1), lambda i: (i, 0)),       # r2' tile
            pl.BlockSpec((N_pad, C_pad), lambda i: (0, 0)),    # src feats (resident)
            pl.BlockSpec((N_pad, E_pad), lambda i: (0, 0)),    # src equ (resident)
            pl.BlockSpec((1, N_pad), lambda i: (0, 0)),        # s2' (resident)
        ],
        out_specs=(
            pl.BlockSpec((tile_m, N_pad), lambda i: (i, 0)),
            pl.BlockSpec((1, 1, N_pad), lambda i: (i, 0, 0)),
        ),
        compiler_params=pltpu.CompilerParams(
            dimension_semantics=("parallel",),
            vmem_limit_bytes=vmem1),
        cost_estimate=p1_cost,
    )(a_feat, a_equ, r2, b_feat, b_equ, s2)

    if not dual_normalization:
        return scores_u

    # Tiny cross-tile reduction of the column partials (num_tiles x N_pad).
    col_sum = jnp.sum(col_part, axis=0)                        # (1, N_pad)
    inv_col = 1.0 / jnp.where(col_sum > 0.0, col_sum, 1.0)     # exact, tiny

    vmem2 = _vmem_limit(tile_m * N_pad * 4, tile_m * N_pad * 4, N_pad * 4,
                        tile_m * N_pad * 4)

    scores = pl.pallas_call(
        _dual_norm_kernel,
        out_shape=jax.ShapeDtypeStruct((M_pad, N_pad), out_dtype),
        grid=grid,
        in_specs=[
            pl.BlockSpec((tile_m, N_pad), lambda i: (i, 0)),
            pl.BlockSpec((1, N_pad), lambda i: (0, 0)),
        ],
        out_specs=pl.BlockSpec((tile_m, N_pad), lambda i: (i, 0)),
        compiler_params=pltpu.CompilerParams(
            dimension_semantics=("parallel",),
            vmem_limit_bytes=vmem2),
        cost_estimate=pl.CostEstimate(
            flops=4 * M_pad * N_pad,
            transcendentals=M_pad,
            bytes_accessed=2 * M_pad * N_pad * 4 + N_pad * 4),
    )(scores_u, inv_col.astype(f32))

    return scores


def superpoint_matching(ref_feats, src_feats, ref_equ, src_equ,
                        num_correspondences, dual_normalization=True,
                        ref_masks=None, src_masks=None):
    """JAX/Pallas equivalent of SuperPointMatching.forward (masks=None path).

    Returns (ref_corr_indices, src_corr_indices, corr_scores).
    """
    if ref_masks is not None or src_masks is not None:
        # TODO(synk): mask compaction (torch.nonzero) needs dynamic shapes.
        raise NotImplementedError("only the masks=None path is implemented")

    M = ref_feats.shape[0]
    N = src_feats.shape[0]
    scores_padded = compute_matching_scores(
        ref_feats, src_feats, ref_equ, src_equ,
        dual_normalization=dual_normalization)
    N_pad = scores_padded.shape[1]

    # top-k directly on the padded matrix: padded entries are exactly 0 and
    # every valid score is > 0, so padded slots are never selected (a valid
    # score underflowing to exactly 0 would tie with padding; vanishingly
    # unlikely after normalization).
    k = min(num_correspondences, M * N)
    corr_scores, corr_indices = lax.top_k(scores_padded.reshape(-1), k)
    ref_corr_indices = corr_indices // N_pad
    src_corr_indices = corr_indices % N_pad
    return ref_corr_indices, src_corr_indices, corr_scores


def _reference_scores(ref_feats, src_feats, ref_equ, src_equ,
                      dual_normalization=True):
    """Pure-JAX f32 reference for sanity checking."""
    xy1 = jnp.dot(ref_feats, src_feats.T, precision="highest")
    ms1 = jnp.maximum(2.0 - 2.0 * xy1, 0.0)
    xy2 = jnp.dot(ref_equ, src_equ.T, precision="highest")
    r2 = jnp.sum(ref_equ ** 2, axis=-1, keepdims=True)
    s2 = jnp.sum(src_equ ** 2, axis=-1, keepdims=True).T
    ms2 = jnp.maximum(r2 - 2.0 * xy2 + s2, 0.0) * 0.1
    scores = jnp.exp(-((1.0 - GAMMA) * ms1 + GAMMA * ms2))
    if dual_normalization:
        scores = (scores / jnp.sum(scores, axis=1, keepdims=True)) * \
                 (scores / jnp.sum(scores, axis=0, keepdims=True))
    return scores


if __name__ == "__main__":
    key = jax.random.PRNGKey(0)
    k1, k2, k3, k4 = jax.random.split(key, 4)

    M, N, C, E = 64, 64, 64, 32
    num_correspondences = 16

    ref_feats = jax.random.normal(k1, (M, C), dtype=jnp.float32)
    src_feats = jax.random.normal(k2, (N, C), dtype=jnp.float32)
    # features are assumed L2-normalized (pairwise_distance(..., normalized=True))
    ref_feats = ref_feats / jnp.linalg.norm(ref_feats, axis=-1, keepdims=True)
    src_feats = src_feats / jnp.linalg.norm(src_feats, axis=-1, keepdims=True)
    ref_equ = jax.random.normal(k3, (M, E), dtype=jnp.float32)
    src_equ = jax.random.normal(k4, (N, E), dtype=jnp.float32)

    ref_idx, src_idx, corr_scores = superpoint_matching(
        ref_feats, src_feats, ref_equ, src_equ, num_correspondences,
        dual_normalization=True)
    jax.block_until_ready((ref_idx, src_idx, corr_scores))

    # Score-matrix check against the f32 reference (valid region only).
    # Tolerance covers bf16 MXU operands + approx row reciprocal.
    scores_padded = compute_matching_scores(ref_feats, src_feats, ref_equ,
                                            src_equ, dual_normalization=True)
    scores_pallas = scores_padded[:M, :N]
    scores_ref = _reference_scores(ref_feats, src_feats, ref_equ, src_equ,
                                   dual_normalization=True)
    assert scores_pallas.shape == (M, N)
    assert jnp.allclose(scores_pallas, scores_ref, rtol=5e-2, atol=1e-6), \
        "Pallas scores diverge from reference"

    # Top-k level checks: decoded indices must be in the valid range and the
    # selected score values must match the reference top-k within tolerance.
    assert bool(jnp.all(ref_idx < M)) and bool(jnp.all(src_idx < N)), \
        "top-k selected a padded entry"
    ref_topk, _ = lax.top_k(scores_ref.reshape(-1), num_correspondences)
    assert jnp.allclose(corr_scores, ref_topk, rtol=5e-2, atol=1e-6), \
        "top-k scores diverge from reference"

    print("KERNEL_OK")
</pallas_src>

<mosaic_0001>
module attributes {stable_mosaic.version = 11 : i64} {
  func.func @_scores_kernel(%arg0: i32, %arg1: memref<64x128xbf16, #tpu.memory_space<vmem>>, %arg2: memref<64x128xbf16, #tpu.memory_space<vmem>>, %arg3: memref<64x1xf32, #tpu.memory_space<vmem>>, %arg4: memref<128x128xbf16, #tpu.memory_space<vmem>>, %arg5: memref<128x128xbf16, #tpu.memory_space<vmem>>, %arg6: memref<1x128xf32, #tpu.memory_space<vmem>>, %arg7: memref<64x128xf32, #tpu.memory_space<vmem>>, %arg8: memref<1x1x128xf32, #tpu.memory_space<vmem>>) attributes {dimension_semantics = [#tpu.dimension_semantics<parallel>], iteration_bounds = array<i64: 1>, scalar_prefetch = 0 : i64, scratch_operands = 0 : i64, tpu.core_type = #tpu.core_type<tc>, window_params = [{transform_indices = @transform_0, window_bounds = array<i64: 64, 128>}, {transform_indices = @transform_1, window_bounds = array<i64: 64, 128>}, {transform_indices = @transform_2, window_bounds = array<i64: 64, 1>}, {pipeline_mode = #tpu.pipeline_mode<synchronous>, transform_indices = @transform_3, window_bounds = array<i64: 128, 128>}, {pipeline_mode = #tpu.pipeline_mode<synchronous>, transform_indices = @transform_4, window_bounds = array<i64: 128, 128>}, {pipeline_mode = #tpu.pipeline_mode<synchronous>, transform_indices = @transform_5, window_bounds = array<i64: 1, 128>}, {transform_indices = @transform_6, window_bounds = array<i64: 64, 128>}, {transform_indices = @transform_7, window_bounds = array<i64: 1, 1, 128>}]} {
    %c0 = arith.constant 0 : index
    %c0_0 = arith.constant 0 : index
    %0 = vector.load %arg1[%c0, %c0_0] : memref<64x128xbf16, #tpu.memory_space<vmem>>, vector<64x128xbf16>
    %c0_1 = arith.constant 0 : index
    %c0_2 = arith.constant 0 : index
    %1 = vector.load %arg4[%c0_1, %c0_2] : memref<128x128xbf16, #tpu.memory_space<vmem>>, vector<128x128xbf16>
    %cst = arith.constant dense<0.000000e+00> : vector<64x128xf32>
    %2 = tpu.matmul %0, %1, %cst {dimension_numbers = #tpu.dot_dimension_numbers<[1], [1], [0], [0], [0, 0, 1, 0], [], []>} : vector<64x128xbf16>, vector<128x128xbf16>, vector<64x128xf32> -> vector<64x128xf32>
    %c0_3 = arith.constant 0 : index
    %c0_4 = arith.constant 0 : index
    %3 = vector.load %arg2[%c0_3, %c0_4] : memref<64x128xbf16, #tpu.memory_space<vmem>>, vector<64x128xbf16>
    %c0_5 = arith.constant 0 : index
    %c0_6 = arith.constant 0 : index
    %4 = vector.load %arg5[%c0_5, %c0_6] : memref<128x128xbf16, #tpu.memory_space<vmem>>, vector<128x128xbf16>
    %cst_7 = arith.constant dense<0.000000e+00> : vector<64x128xf32>
    %5 = tpu.matmul %3, %4, %cst_7 {dimension_numbers = #tpu.dot_dimension_numbers<[1], [1], [0], [0], [0, 0, 1, 0], [], []>} : vector<64x128xbf16>, vector<128x128xbf16>, vector<64x128xf32> -> vector<64x128xf32>
    %cst_8 = arith.constant 1.000000e+00 : f32
    %6 = vector.broadcast %cst_8 : f32 to vector<64x128xf32>
    %7 = arith.subf %6, %2 : vector<64x128xf32>
    %cst_9 = arith.constant 0.000000e+00 : f32
    %8 = vector.broadcast %cst_9 : f32 to vector<64x128xf32>
    %9 = arith.maximumf %7, %8 : vector<64x128xf32>
    %c0_10 = arith.constant 0 : index
    %c0_11 = arith.constant 0 : index
    %10 = vector.load %arg3[%c0_10, %c0_11] : memref<64x1xf32, #tpu.memory_space<vmem>>, vector<64x1xf32>
    %c0_12 = arith.constant 0 : index
    %c0_13 = arith.constant 0 : index
    %11 = vector.load %arg6[%c0_12, %c0_13] : memref<1x128xf32, #tpu.memory_space<vmem>>, vector<1x128xf32>
    %12 = vector.broadcast %10 : vector<64x1xf32> to vector<64x128xf32>
    %13 = vector.broadcast %11 : vector<1x128xf32> to vector<64x128xf32>
    %14 = arith.addf %12, %13 : vector<64x128xf32>
    %15 = arith.subf %14, %5 : vector<64x128xf32>
    %cst_14 = arith.constant 0.000000e+00 : f32
    %16 = vector.broadcast %cst_14 : f32 to vector<64x128xf32>
    %17 = arith.maximumf %15, %16 : vector<64x128xf32>
    %18 = arith.addf %9, %17 : vector<64x128xf32>
    %cst_15 = arith.constant 0.000000e+00 : f32
    %19 = vector.broadcast %cst_15 : f32 to vector<64x128xf32>
    %20 = arith.subf %19, %18 : vector<64x128xf32>
    %21 = math.exp %20 : vector<64x128xf32>
    %c0_16 = arith.constant 0 : index
    %c0_17 = arith.constant 0 : index
    %22 = vector.load %arg7[%c0_16, %c0_17] : memref<64x128xf32, #tpu.memory_space<vmem>>, vector<64x128xf32>
    tpu.vector_store %arg7[%c0_16, %c0_17], %21 {strides = array<i32>} : memref<64x128xf32, #tpu.memory_space<vmem>>, vector<64x128xf32>,
    %cst_18 = arith.constant dense<0.000000e+00> : vector<128xf32>
    %23 = vector.multi_reduction <add>, %21, %cst_18 [0] : vector<64x128xf32> to vector<128xf32>
    %24 = vector.shape_cast %23 : vector<128xf32> to vector<1x128xf32>
    %c0_19 = arith.constant 0 : index
    %c0_20 = arith.constant 0 : index
    %c0_21 = arith.constant 0 : index
    %25 = vector.load %arg8[%c0_19, %c0_20, %c0_21] : memref<1x1x128xf32, #tpu.memory_space<vmem>>, vector<1x1x128xf32>
    %26 = vector.shape_cast %25 : vector<1x1x128xf32> to vector<1x128xf32>
    %27 = vector.shape_cast %24 : vector<1x128xf32> to vector<1x1x128xf32>
    tpu.vector_store %arg8[%c0_19, %c0_20, %c0_21], %27 {strides = array<i32>} : memref<1x1x128xf32, #tpu.memory_space<vmem>>, vector<1x1x128xf32>,
    return
  }
  func.func @transform_0(%arg0: i32) -> (i32, i32) {
    %c0_i32 = arith.constant 0 : i32
    %c0_i32_0 = arith.constant 0 : i32
    return %arg0, %c0_i32 : i32, i32
  }
  func.func @transform_1(%arg0: i32) -> (i32, i32) {
    %c0_i32 = arith.constant 0 : i32
    %c0_i32_0 = arith.constant 0 : i32
    return %arg0, %c0_i32 : i32, i32
  }
  func.func @transform_2(%arg0: i32) -> (i32, i32) {
    %c0_i32 = arith.constant 0 : i32
    %c0_i32_0 = arith.constant 0 : i32
    return %arg0, %c0_i32 : i32, i32
  }
  func.func @transform_3(%arg0: i32) -> (i32, i32) {
    %c0_i32 = arith.constant 0 : i32
    %c0_i32_0 = arith.constant 0 : i32
    %c0_i32_1 = arith.constant 0 : i32
    return %c0_i32, %c0_i32_0 : i32, i32
  }
  func.func @transform_4(%arg0: i32) -> (i32, i32) {
    %c0_i32 = arith.constant 0 : i32
    %c0_i32_0 = arith.constant 0 : i32
    %c0_i32_1 = arith.constant 0 : i32
    return %c0_i32, %c0_i32_0 : i32, i32
  }
  func.func @transform_5(%arg0: i32) -> (i32, i32) {
    %c0_i32 = arith.constant 0 : i32
    %c0_i32_0 = arith.constant 0 : i32
    %c0_i32_1 = arith.constant 0 : i32
    return %c0_i32, %c0_i32_0 : i32, i32
  }
  func.func @transform_6(%arg0: i32) -> (i32, i32) {
    %c0_i32 = arith.constant 0 : i32
    %c0_i32_0 = arith.constant 0 : i32
    return %arg0, %c0_i32 : i32, i32
  }
  func.func @transform_7(%arg0: i32) -> (i32, i32, i32) {
    %c0_i32 = arith.constant 0 : i32
    %c0_i32_0 = arith.constant 0 : i32
    %c0_i32_1 = arith.constant 0 : i32
    return %arg0, %c0_i32, %c0_i32_0 : i32, i32, i32
  }
}

</mosaic_0001>

<llo_original>
// kernel: tpu_custom_call.1
$region0: #{tpu_custom_call.1}
  #allocation0 [shape = 'u32[]', space=smem, size = 0x4, offset = 0x4, fixed_abs, tag = 'smem constant byte address 0x4 - core index']
  #allocation1 [shape = 'u32[144,128]{1,0:T(1,128)}', space=vmem, size = 0x12000, scoped, tag = 'internal scratch']
  %s0 = inlined_call_operand.hbm [shape: bf16[64,128], index: 0, kind: input, shape index: {}]
  %s1 = inlined_call_operand.hbm [shape: bf16[64,128], index: 1, kind: input, shape index: {}]
  %s2 = inlined_call_operand.vmem [shape: f32[64,1], index: 2, kind: input, shape index: {}]
  %s3 = inlined_call_operand.vmem [shape: bf16[128,128], index: 3, kind: input, shape index: {}]
  %s4 = inlined_call_operand.hbm [shape: bf16[128,128], index: 4, kind: input, shape index: {}]
  %s5 = inlined_call_operand.vmem [shape: f32[1,128], index: 5, kind: input, shape index: {}]
  %s6 = inlined_call_operand.hbm [shape: f32[64,128], index: 6, kind: output, shape index: {0}]
  %s7 = inlined_call_operand.hbm [shape: f32[1,1,128], index: 7, kind: output, shape index: {1}]
  %8 = xla_tuple %s6, %s7
  %s9 = sld [smem:[#allocation0]]
  $region54: #{tpu_custom_call.1} parent=0
    _
  %s11 = ssub.s32 1, %s9
  %s12 = scalar_select 0, %s11, %s9
  $region1: #{tpu_custom_call.1} parent=0
    #allocation2 [shape = 'u8[16384]{0}', space=vmem, size = 0x4000, scoped, tag = 'input window, operand 0, single buffered']
    #allocation3 [shape = 's32[1]{0}', space=sflag, size = 0x4, scoped, tag = 'scoped memory for tpu_custom_call.1']
    #allocation4 [shape = 's32[1]{0}', space=sflag, size = 0x4, scoped, tag = 'scoped memory for tpu_custom_call.1']
    #allocation5 [shape = 'u8[16384]{0}', space=vmem, size = 0x4000, scoped, tag = 'input window, operand 1, single buffered']
    #allocation6 [shape = 's32[1]{0}', space=sflag, size = 0x4, scoped, tag = 'scoped memory for tpu_custom_call.1']
    #allocation7 [shape = 'u8[32768]{0}', space=vmem, size = 0x8000, scoped, tag = 'input window, operand 4, single buffered']
    #allocation8 [shape = 'u8[32768]{0}', space=vmem, size = 0x8000, scoped, tag = 'output window, operand 0, single buffered']
    #allocation9 [shape = 'u8[512]{0}', space=vmem, size = 0x400, scoped, tag = 'output window, operand 1, single buffered']
    #allocation10 [shape = 's32[1]{0}', space=sflag, size = 0x4, scoped, tag = 'scoped memory for tpu_custom_call.1']
    %13 = vsyncpa [#allocation3], 0
    %14 = vsyncpa [#allocation6], 0
    %15 = vsyncpa [#allocation4], 0
    %16 = vsyncpa [#allocation10], 0
    // Predicated region
    $region2: #{tpu_custom_call.1} parent=1 // pred_check
      _
    $region3: #{tpu_custom_call.1} parent=1 // pred_check_branch
      %18 = sbr.rel (0) target = $region5
    $region4: #{tpu_custom_call.1} parent=1 // pred_region
      %s20 = ssub.s32 512, 512
      %21 = vsyncadd [#allocation3], %s20
      %s22 = sshll.u32 [#allocation2], 4
      %s23 = int_to_ptr.vmem [resolvable:$true] %s22
      %28 = dma.hbm_to_vmem [thread:$0]  %s0, 512, %s23, [#allocation3], 64, 64, 4
    $region5: #{tpu_custom_call.1} parent=1 // pred_fallthru
      _
    // Predicated region
    $region6: #{tpu_custom_call.1} parent=1 // pred_check
      _
    $region7: #{tpu_custom_call.1} parent=1 // pred_check_branch
      %30 = sbr.rel (0) target = $region9
    $region8: #{tpu_custom_call.1} parent=1 // pred_region
      %s32 = ssub.s32 512, 512
      %33 = vsyncadd [#allocation6], %s32
      %s34 = sshll.u32 [#allocation5], 4
      %s35 = int_to_ptr.vmem [resolvable:$true] %s34
      %40 = dma.hbm_to_vmem [thread:$0]  %s1, 512, %s35, [#allocation6], 64, 64, 4
    $region9: #{tpu_custom_call.1} parent=1 // pred_fallthru
      _
    // Predicated region
    $region10: #{tpu_custom_call.1} parent=1 // pred_check
      _
    $region11: #{tpu_custom_call.1} parent=1 // pred_check_branch
      %42 = sbr.rel (0) target = $region13
    $region12: #{tpu_custom_call.1} parent=1 // pred_region
      _
    $region13: #{tpu_custom_call.1} parent=1 // pred_fallthru
      _
    // Predicated region
    $region14: #{tpu_custom_call.1} parent=1 // pred_check
      _
    $region15: #{tpu_custom_call.1} parent=1 // pred_check_branch
      %44 = sbr.rel (0) target = $region17
    $region16: #{tpu_custom_call.1} parent=1 // pred_region
      _
    $region17: #{tpu_custom_call.1} parent=1 // pred_fallthru
      _
    // Predicated region
    $region18: #{tpu_custom_call.1} parent=1 // pred_check
      _
    $region19: #{tpu_custom_call.1} parent=1 // pred_check_branch
      %46 = sbr.rel (0) target = $region21
    $region20: #{tpu_custom_call.1} parent=1 // pred_region
      %s48 = ssub.s32 1024, 1024
      %49 = vsyncadd [#allocation6], %s48
      %s50 = sshll.u32 [#allocation7], 4
      %s51 = int_to_ptr.vmem [resolvable:$true] %s50
      %56 = dma.hbm_to_vmem [thread:$0]  %s4, 1024, %s51, [#allocation6], 64, 64, 4
    $region21: #{tpu_custom_call.1} parent=1 // pred_fallthru
      _
    // Predicated region
    $region22: #{tpu_custom_call.1} parent=1 // pred_check
      _
    $region23: #{tpu_custom_call.1} parent=1 // pred_check_branch
      %58 = sbr.rel (0) target = $region25
    $region24: #{tpu_custom_call.1} parent=1 // pred_region
      _
    $region25: #{tpu_custom_call.1} parent=1 // pred_fallthru
      _
    // Predicated region
    $region26: #{tpu_custom_call.1} parent=1 // pred_check
      _
    $region27: #{tpu_custom_call.1} parent=1 // pred_check_branch
      %60 = sbr.rel (0) target = $region29
    $region28: #{tpu_custom_call.1} parent=1 // pred_region
      %61 = dma.done [#allocation3], 512
    $region29: #{tpu_custom_call.1} parent=1 // pred_fallthru
      _
    // Predicated region
    $region30: #{tpu_custom_call.1} parent=1 // pred_check
      _
    $region31: #{tpu_custom_call.1} parent=1 // pred_check_branch
      %63 = sbr.rel (0) target = $region33
    $region32: #{tpu_custom_call.1} parent=1 // pred_region
      %64 = dma.done [#allocation6], 512
    $region33: #{tpu_custom_call.1} parent=1 // pred_fallthru
      _
    // Predicated region
    $region34: #{tpu_custom_call.1} parent=1 // pred_check
      _
    $region35: #{tpu_custom_call.1} parent=1 // pred_check_branch
      %66 = sbr.rel (0) target = $region37
    $region36: #{tpu_custom_call.1} parent=1 // pred_region
      %67 = dma.done [#allocation6], 1024
    $region37: #{tpu_custom_call.1} parent=1 // pred_fallthru
      _
    %v69 = vld [vmem:[#allocation2] sm:$0xf]
    %v70 = vld [vmem:[#allocation2 + $0x4] sm:$0xf]
    %v71 = vld [vmem:[#allocation2 + $0x8] sm:$0xf]
    %v72 = vld [vmem:[#allocation2 + $0xc] sm:$0xf]
    %v73 = vld [vmem:[#allocation2 + $0x10] sm:$0xf]
    %v74 = vld [vmem:[#allocation2 + $0x14] sm:$0xf]
    %v75 = vld [vmem:[#allocation2 + $0x18] sm:$0xf]
    %v76 = vld [vmem:[#allocation2 + $0x1c] sm:$0xf]
    %v77 = vld [vmem:[%s3] sm:$0xf]
    %v78 = vld [vmem:[%s3 + $0x4] sm:$0xf]
    %v79 = vld [vmem:[%s3 + $0x8] sm:$0xf]
    %v80 = vld [vmem:[%s3 + $0xc] sm:$0xf]
    %v81 = vld [vmem:[%s3 + $0x10] sm:$0xf]
    %v82 = vld [vmem:[%s3 + $0x14] sm:$0xf]
    %v83 = vld [vmem:[%s3 + $0x18] sm:$0xf]
    %v84 = vld [vmem:[%s3 + $0x1c] sm:$0xf]
    %v85 = vld [vmem:[%s3 + $0x20] sm:$0xf]
    %v86 = vld [vmem:[%s3 + $0x24] sm:$0xf]
    %v87 = vld [vmem:[%s3 + $0x28] sm:$0xf]
    %v88 = vld [vmem:[%s3 + $0x2c] sm:$0xf]
    %v89 = vld [vmem:[%s3 + $0x30] sm:$0xf]
    %v90 = vld [vmem:[%s3 + $0x34] sm:$0xf]
    %v91 = vld [vmem:[%s3 + $0x38] sm:$0xf]
    %v92 = vld [vmem:[%s3 + $0x3c] sm:$0xf]
    %v101 = vunpack.c.l.b16 %v69
    %v102 = vunpack.c.l.b16 %v70
    %v103 = vunpack.c.l.b16 %v71
    %v104 = vunpack.c.l.b16 %v72
    %v105 = vunpack.c.l.b16 %v73
    %v106 = vunpack.c.l.b16 %v74
    %v107 = vunpack.c.l.b16 %v75
    %v108 = vunpack.c.l.b16 %v76
    %v109 = vpack.c.b16 %v102, %v101
    %v110 = vpack.c.b16 %v104, %v103
    %v111 = vpack.c.b16 %v106, %v105
    %v112 = vpack.c.b16 %v108, %v107
    %v133 = vunpack.c.l.b16 %v77
    %v134 = vunpack.c.l.b16 %v78
    %v135 = vunpack.c.l.b16 %v79
    %v136 = vunpack.c.l.b16 %v80
    %v137 = vunpack.c.l.b16 %v81
    %v138 = vunpack.c.l.b16 %v82
    %v139 = vunpack.c.l.b16 %v83
    %v140 = vunpack.c.l.b16 %v84
    %v141 = vunpack.c.l.b16 %v85
    %v142 = vunpack.c.l.b16 %v86
    %v143 = vunpack.c.l.b16 %v87
    %v144 = vunpack.c.l.b16 %v88
    %v145 = vunpack.c.l.b16 %v89
    %v146 = vunpack.c.l.b16 %v90
    %v147 = vunpack.c.l.b16 %v91
    %v148 = vunpack.c.l.b16 %v92
    %v149 = vpack.c.b16 %v134, %v133
    %v150 = vpack.c.b16 %v136, %v135
    %v151 = vpack.c.b16 %v138, %v137
    %v152 = vpack.c.b16 %v140, %v139
    %v153 = vpack.c.b16 %v142, %v141
    %v154 = vpack.c.b16 %v144, %v143
    %v155 = vpack.c.b16 %v146, %v145
    %v156 = vpack.c.b16 %v148, %v147
    %165 = vmatprep.subr.bf16.mxu0 0
    %166 = vmatpush1.bf16.xpose.msra.mxu0 %v156
    %167 = vmatprep.subr.bf16.mxu0 0
    %168 = vmatpush1.bf16.xpose.msra.mxu0 %v155
    %169 = vmatprep.subr.bf16.mxu0 0
    %170 = vmatpush1.bf16.xpose.msra.mxu0 %v154
    %171 = vmatprep.subr.bf16.mxu0 0
    %172 = vmatpush1.bf16.xpose.msra.mxu0 %v153
    %173 = vmatprep.subr.bf16.mxu0 0
    %174 = vmatpush1.bf16.xpose.msra.mxu0 %v152
    %175 = vmatprep.subr.bf16.mxu0 0
    %176 = vmatpush1.bf16.xpose.msra.mxu0 %v151
    %177 = vmatprep.subr.bf16.mxu0 0
    %178 = vmatpush1.bf16.xpose.msra.mxu0 %v150
    %179 = vmatprep.subr.bf16.mxu0 0
    %180 = vmatpush1.bf16.xpose.msra.mxu0 %v149
    %181 = vmatprep.subr.bf16.mxu0 0
    %182 = vmatpush2.bf16.xpose.msra.mxu0 0
    %183 = vmatprep.subr.bf16.mxu0 0
    %184 = vmatpush2.bf16.xpose.msra.mxu0 0
    %185 = vmatprep.subr.bf16.mxu0 0
    %186 = vmatpush2.bf16.xpose.msra.mxu0 0
    %187 = vmatprep.subr.bf16.mxu0 0
    %188 = vmatpush2.bf16.xpose.msra.mxu0 0
    %189 = vmatprep.subr.bf16.mxu0 0
    %190 = vmatpush2.bf16.xpose.msra.mxu0 0
    %191 = vmatprep.subr.bf16.mxu0 0
    %192 = vmatpush2.bf16.xpose.msra.mxu0 0
    %193 = vmatprep.subr.bf16.mxu0 0
    %194 = vmatpush2.bf16.xpose.msra.mxu0 0
    %195 = vmatprep.subr.bf16.mxu0 0
    %196 = vmatpush2.bf16.xpose.msra.mxu0 0
    %197 = vmatprep.mubr.bf16.mxu0 0
    %198 = vmatmul.mubr.bf16.gmra.mxu0 %v109
    %v199 = vpop.f32.mrf.mxu0
    %v200 = vadd.f32 0.0, %v199
    %v201 = vpop.f32.mrf.mxu0
    %v202 = vpop.f32.mrf.mxu0
    %v203 = vadd.f32 0.0, %v202
    %v204 = vpop.f32.mrf.mxu0
    %205 = vmatprep.mubr.bf16.mxu0 0
    %206 = vmatmul.mubr.bf16.gmra.mxu0 %v110
    %v207 = vpop.f32.mrf.mxu0
    %v208 = vadd.f32 0.0, %v207
    %v209 = vpop.f32.mrf.mxu0
    %v210 = vpop.f32.mrf.mxu0
    %v211 = vadd.f32 0.0, %v210
    %v212 = vpop.f32.mrf.mxu0
    %213 = vmatprep.mubr.bf16.mxu0 0
    %214 = vmatmul.mubr.bf16.gmra.mxu0 %v111
    %v215 = vpop.f32.mrf.mxu0
    %v216 = vadd.f32 0.0, %v215
    %v217 = vpop.f32.mrf.mxu0
    %v218 = vpop.f32.mrf.mxu0
    %v219 = vadd.f32 0.0, %v218
    %v220 = vpop.f32.mrf.mxu0
    %221 = vmatprep.mubr.bf16.mxu0 0
    %222 = vmatmul.mubr.bf16.gmra.mxu0 %v112
    %v223 = vpop.f32.mrf.mxu0
    %v224 = vadd.f32 0.0, %v223
    %v225 = vpop.f32.mrf.mxu0
    %v226 = vpop.f32.mrf.mxu0
    %v227 = vadd.f32 0.0, %v226
    %v228 = vpop.f32.mrf.mxu0
    %229 = vdwg.mxu0
    %v230 = vld [vmem:[#allocation5] sm:$0xf]
    %v231 = vld [vmem:[#allocation5 + $0x4] sm:$0xf]
    %v232 = vld [vmem:[#allocation5 + $0x8] sm:$0xf]
    %v233 = vld [vmem:[#allocation5 + $0xc] sm:$0xf]
    %v234 = vld [vmem:[#allocation5 + $0x10] sm:$0xf]
    %v235 = vld [vmem:[#allocation5 + $0x14] sm:$0xf]
    %v236 = vld [vmem:[#allocation5 + $0x18] sm:$0xf]
    %v237 = vld [vmem:[#allocation5 + $0x1c] sm:$0xf]
    %v238 = vld [vmem:[#allocation7] sm:$0xf]
    %v239 = vld [vmem:[#allocation7 + $0x4] sm:$0xf]
    %v240 = vld [vmem:[#allocation7 + $0x8] sm:$0xf]
    %v241 = vld [vmem:[#allocation7 + $0xc] sm:$0xf]
    %v242 = vld [vmem:[#allocation7 + $0x10] sm:$0xf]
    %v243 = vld [vmem:[#allocation7 + $0x14] sm:$0xf]
    %v244 = vld [vmem:[#allocation7 + $0x18] sm:$0xf]
    %v245 = vld [vmem:[#allocation7 + $0x1c] sm:$0xf]
    %v246 = vld [vmem:[#allocation7 + $0x20] sm:$0xf]
    %v247 = vld [vmem:[#allocation7 + $0x24] sm:$0xf]
    %v248 = vld [vmem:[#allocation7 + $0x28] sm:$0xf]
    %v249 = vld [vmem:[#allocation7 + $0x2c] sm:$0xf]
    %v250 = vld [vmem:[#allocation7 + $0x30] sm:$0xf]
    %v251 = vld [vmem:[#allocation7 + $0x34] sm:$0xf]
    %v252 = vld [vmem:[#allocation7 + $0x38] sm:$0xf]
    %v253 = vld [vmem:[#allocation7 + $0x3c] sm:$0xf]
    %v262 = vunpack.c.l.b16 %v230
    %v263 = vunpack.c.l.b16 %v231
    %v264 = vunpack.c.l.b16 %v232
    %v265 = vunpack.c.l.b16 %v233
    %v266 = vunpack.c.l.b16 %v234
    %v267 = vunpack.c.l.b16 %v235
    %v268 = vunpack.c.l.b16 %v236
    %v269 = vunpack.c.l.b16 %v237
    %v270 = vpack.c.b16 %v263, %v262
    %v271 = vpack.c.b16 %v265, %v264
    %v272 = vpack.c.b16 %v267, %v266
    %v273 = vpack.c.b16 %v269, %v268
    %v294 = vunpack.c.l.b16 %v238
    %v295 = vunpack.c.l.b16 %v239
    %v296 = vunpack.c.l.b16 %v240
    %v297 = vunpack.c.l.b16 %v241
    %v298 = vunpack.c.l.b16 %v242
    %v299 = vunpack.c.l.b16 %v243
    %v300 = vunpack.c.l.b16 %v244
    %v301 = vunpack.c.l.b16 %v245
    %v302 = vunpack.c.l.b16 %v246
    %v303 = vunpack.c.l.b16 %v247
    %v304 = vunpack.c.l.b16 %v248
    %v305 = vunpack.c.l.b16 %v249
    %v306 = vunpack.c.l.b16 %v250
    %v307 = vunpack.c.l.b16 %v251
    %v308 = vunpack.c.l.b16 %v252
    %v309 = vunpack.c.l.b16 %v253
    %v310 = vpack.c.b16 %v295, %v294
    %v311 = vpack.c.b16 %v297, %v296
    %v312 = vpack.c.b16 %v299, %v298
    %v313 = vpack.c.b16 %v301, %v300
    %v314 = vpack.c.b16 %v303, %v302
    %v315 = vpack.c.b16 %v305, %v304
    %v316 = vpack.c.b16 %v307, %v306
    %v317 = vpack.c.b16 %v309, %v308
    %326 = vmatprep.subr.bf16.mxu0 0
    %327 = vmatpush1.bf16.xpose.msra.mxu0 %v317
    %328 = vmatprep.subr.bf16.mxu0 0
    %329 = vmatpush1.bf16.xpose.msra.mxu0 %v316
    %330 = vmatprep.subr.bf16.mxu0 0
    %331 = vmatpush1.bf16.xpose.msra.mxu0 %v315
    %332 = vmatprep.subr.bf16.mxu0 0
    %333 = vmatpush1.bf16.xpose.msra.mxu0 %v314
    %334 = vmatprep.subr.bf16.mxu0 0
    %335 = vmatpush1.bf16.xpose.msra.mxu0 %v313
    %336 = vmatprep.subr.bf16.mxu0 0
    %337 = vmatpush1.bf16.xpose.msra.mxu0 %v312
    %338 = vmatprep.subr.bf16.mxu0 0
    %339 = vmatpush1.bf16.xpose.msra.mxu0 %v311
    %340 = vmatprep.subr.bf16.mxu0 0
    %341 = vmatpush1.bf16.xpose.msra.mxu0 %v310
    %342 = vmatprep.subr.bf16.mxu0 0
    %343 = vmatpush2.bf16.xpose.msra.mxu0 0
    %344 = vmatprep.subr.bf16.mxu0 0
    %345 = vmatpush2.bf16.xpose.msra.mxu0 0
    %346 = vmatprep.subr.bf16.mxu0 0
    %347 = vmatpush2.bf16.xpose.msra.mxu0 0
    %348 = vmatprep.subr.bf16.mxu0 0
    %349 = vmatpush2.bf16.xpose.msra.mxu0 0
    %350 = vmatprep.subr.bf16.mxu0 0
    %351 = vmatpush2.bf16.xpose.msra.mxu0 0
    %352 = vmatprep.subr.bf16.mxu0 0
    %353 = vmatpush2.bf16.xpose.msra.mxu0 0
    %354 = vmatprep.subr.bf16.mxu0 0
    %355 = vmatpush2.bf16.xpose.msra.mxu0 0
    %356 = vmatprep.subr.bf16.mxu0 0
    %357 = vmatpush2.bf16.xpose.msra.mxu0 0
    %358 = vmatprep.mubr.bf16.mxu0 0
    %359 = vmatmul.mubr.bf16.gmra.mxu0 %v270
    %v360 = vpop.f32.mrf.mxu0
    %v361 = vadd.f32 0.0, %v360
    %v362 = vpop.f32.mrf.mxu0
    %v363 = vpop.f32.mrf.mxu0
    %v364 = vadd.f32 0.0, %v363
    %v365 = vpop.f32.mrf.mxu0
    %366 = vmatprep.mubr.bf16.mxu0 0
    %367 = vmatmul.mubr.bf16.gmra.mxu0 %v271
    %v368 = vpop.f32.mrf.mxu0
    %v369 = vadd.f32 0.0, %v368
    %v370 = vpop.f32.mrf.mxu0
    %v371 = vpop.f32.mrf.mxu0
    %v372 = vadd.f32 0.0, %v371
    %v373 = vpop.f32.mrf.mxu0
    %374 = vmatprep.mubr.bf16.mxu0 0
    %375 = vmatmul.mubr.bf16.gmra.mxu0 %v272
    %v376 = vpop.f32.mrf.mxu0
    %v377 = vadd.f32 0.0, %v376
    %v378 = vpop.f32.mrf.mxu0
    %v379 = vpop.f32.mrf.mxu0
    %v380 = vadd.f32 0.0, %v379
    %v381 = vpop.f32.mrf.mxu0
    %382 = vmatprep.mubr.bf16.mxu0 0
    %383 = vmatmul.mubr.bf16.gmra.mxu0 %v273
    %v384 = vpop.f32.mrf.mxu0
    %v385 = vadd.f32 0.0, %v384
    %v386 = vpop.f32.mrf.mxu0
    %v387 = vpop.f32.mrf.mxu0
    %v388 = vadd.f32 0.0, %v387
    %v389 = vpop.f32.mrf.mxu0
    %390 = vdwg.mxu0
    %v391 = vsub.f32 1.0, %v200
    %v392 = vsub.f32 1.0, %v203
    %v393 = vsub.f32 1.0, %v208
    %v394 = vsub.f32 1.0, %v211
    %v395 = vsub.f32 1.0, %v216
    %v396 = vsub.f32 1.0, %v219
    %v397 = vsub.f32 1.0, %v224
    %v398 = vsub.f32 1.0, %v227
    %v399 = vmax.f32 %v391, 0.0
    %v400 = vmax.f32 %v392, 0.0
    %v401 = vmax.f32 %v393, 0.0
    %v402 = vmax.f32 %v394, 0.0
    %v403 = vmax.f32 %v395, 0.0
    %v404 = vmax.f32 %v396, 0.0
    %v405 = vmax.f32 %v397, 0.0
    %v406 = vmax.f32 %v398, 0.0
    %v407 = vld [vmem:[%s2] sm:$0xff]
    %v408 = vld [vmem:[%s2 + $0x8] sm:$0xff]
    %v409 = vld [vmem:[%s2 + $0x10] sm:$0xff]
    %v410 = vld [vmem:[%s2 + $0x18] sm:$0xff]
    %v411 = vld [vmem:[%s2 + $0x20] sm:$0xff]
    %v412 = vld [vmem:[%s2 + $0x28] sm:$0xff]
    %v413 = vld [vmem:[%s2 + $0x30] sm:$0xff]
    %v414 = vld [vmem:[%s2 + $0x38] sm:$0xff]
    %v415 = vld [vmem:[%s5] sm:$0x1]
    %417 = vset.pattern.permute.xlu0 0
    %418 = vperm.xlu0 %417, %v407
    %v419 = vpop.permute.xlu0 %418
    %422 = vset.pattern.permute.xlu0 0
    %423 = vperm.xlu0 %422, %v408
    %v424 = vpop.permute.xlu0 %423
    %427 = vset.pattern.permute.xlu0 0
    %428 = vperm.xlu0 %427, %v409
    %v429 = vpop.permute.xlu0 %428
    %432 = vset.pattern.permute.xlu0 0
    %433 = vperm.xlu0 %432, %v410
    %v434 = vpop.permute.xlu0 %433
    %437 = vset.pattern.permute.xlu0 0
    %438 = vperm.xlu0 %437, %v411
    %v439 = vpop.permute.xlu0 %438
    %442 = vset.pattern.permute.xlu0 0
    %443 = vperm.xlu0 %442, %v412
    %v444 = vpop.permute.xlu0 %443
    %447 = vset.pattern.permute.xlu0 0
    %448 = vperm.xlu0 %447, %v413
    %v449 = vpop.permute.xlu0 %448
    %452 = vset.pattern.permute.xlu0 0
    %453 = vperm.xlu0 %452, %v414
    %v454 = vpop.permute.xlu0 %453
    %v457 = vlaneseq
    %v458 = vshrl.u32 %v457, 7
    %v459 = vsub.s32 0, %v458
    %v460 = vrot.slane %v415, %v459
    %v462 = vadd.f32 %v419, %v460
    %v463 = vadd.f32 %v424, %v460
    %v464 = vadd.f32 %v429, %v460
    %v465 = vadd.f32 %v434, %v460
    %v466 = vadd.f32 %v439, %v460
    %v467 = vadd.f32 %v444, %v460
    %v468 = vadd.f32 %v449, %v460
    %v469 = vadd.f32 %v454, %v460
    %v470 = vsub.f32 %v462, %v361
    %v471 = vsub.f32 %v463, %v364
    %v472 = vsub.f32 %v464, %v369
    %v473 = vsub.f32 %v465, %v372
    %v474 = vsub.f32 %v466, %v377
    %v475 = vsub.f32 %v467, %v380
    %v476 = vsub.f32 %v468, %v385
    %v477 = vsub.f32 %v469, %v388
    %v478 = vmax.f32 %v470, 0.0
    %v479 = vmax.f32 %v471, 0.0
    %v480 = vmax.f32 %v472, 0.0
    %v481 = vmax.f32 %v473, 0.0
    %v482 = vmax.f32 %v474, 0.0
    %v483 = vmax.f32 %v475, 0.0
    %v484 = vmax.f32 %v476, 0.0
    %v485 = vmax.f32 %v477, 0.0
    %v486 = vadd.f32 %v399, %v478
    %v487 = vadd.f32 %v400, %v479
    %v488 = vadd.f32 %v401, %v480
    %v489 = vadd.f32 %v402, %v481
    %v490 = vadd.f32 %v403, %v482
    %v491 = vadd.f32 %v404, %v483
    %v492 = vadd.f32 %v405, %v484
    %v493 = vadd.f32 %v406, %v485
    %v494 = vsub.f32 0.0, %v486
    %v495 = vsub.f32 0.0, %v487
    %v496 = vsub.f32 0.0, %v488
    %v497 = vsub.f32 0.0, %v489
    %v498 = vsub.f32 0.0, %v490
    %v499 = vsub.f32 0.0, %v491
    %v500 = vsub.f32 0.0, %v492
    %v501 = vsub.f32 0.0, %v493
    %v502 = vmul.f32 %v494, 1.442695
    %v503 = vpow.pop %v502
    %v504 = vmul.f32 %v495, 1.442695
    %v505 = vpow.pop %v504
    %v506 = vmul.f32 %v496, 1.442695
    %v507 = vpow.pop %v506
    %v508 = vmul.f32 %v497, 1.442695
    %v509 = vpow.pop %v508
    %v510 = vmul.f32 %v498, 1.442695
    %v511 = vpow.pop %v510
    %v512 = vmul.f32 %v499, 1.442695
    %v513 = vpow.pop %v512
    %v514 = vmul.f32 %v500, 1.442695
    %v515 = vpow.pop %v514
    %v516 = vmul.f32 %v501, 1.442695
    %v517 = vpow.pop %v516
    %518 = vst [vmem:[#allocation8] sm:$0xff] %v503
    %519 = vst [vmem:[#allocation8 + $0x8] sm:$0xff] %v505
    %520 = vst [vmem:[#allocation8 + $0x10] sm:$0xff] %v507
    %521 = vst [vmem:[#allocation8 + $0x18] sm:$0xff] %v509
    %522 = vst [vmem:[#allocation8 + $0x20] sm:$0xff] %v511
    %523 = vst [vmem:[#allocation8 + $0x28] sm:$0xff] %v513
    %524 = vst [vmem:[#allocation8 + $0x30] sm:$0xff] %v515
    %525 = vst [vmem:[#allocation8 + $0x38] sm:$0xff] %v517
    %v526 = vadd.f32 %v503, %v505
    %v527 = vadd.f32 %v526, %v507
    %v528 = vadd.f32 %v527, %v509
    %v529 = vadd.f32 %v528, %v511
    %v530 = vadd.f32 %v529, %v513
    %v531 = vadd.f32 %v530, %v515
    %v532 = vadd.f32 %v531, %v517
    %v533 = vrot.slane %v532, 4
    %v534 = vadd.f32 %v532, %v533
    %v535 = vrot.slane %v534, 2
    %v536 = vadd.f32 %v534, %v535
    %v537 = vrot.slane %v536, 1
    %v538 = vadd.f32 %v536, %v537
    %539 = vst [vmem:[#allocation9] sm:$0x1] %v538
    // Predicated region
    $region38: #{tpu_custom_call.1} parent=1 // pred_check
      _
    $region39: #{tpu_custom_call.1} parent=1 // pred_check_branch
      %541 = sbr.rel (0) target = $region41
    $region40: #{tpu_custom_call.1} parent=1 // pred_region
      %s543 = ssub.s32 1024, 1024
      %544 = vsyncadd [#allocation4], %s543
      %s545 = sshll.u32 [#allocation8], 4
      %s546 = int_to_ptr.vmem [resolvable:$true] %s545
      %551 = dma.vmem_to_hbm [thread:$0]  %s546, 1024, %s6, [#allocation4], 128, 128, 8
    $region41: #{tpu_custom_call.1} parent=1 // pred_fallthru
      _
    // Predicated region
    $region42: #{tpu_custom_call.1} parent=1 // pred_check
      _
    $region43: #{tpu_custom_call.1} parent=1 // pred_check_branch
      %553 = sbr.rel (0) target = $region45
    $region44: #{tpu_custom_call.1} parent=1 // pred_region
      %s555 = ssub.s32 16, 16
      %556 = vsyncadd [#allocation10], %s555
      %s558 = sshll.u32 [#allocation9], 4
      %s559 = int_to_ptr.vmem [resolvable:$true] %s558
      %561 = dma.vmem_to_hbm [thread:$0]  %s559, 16, %s7, [#allocation10]
    $region45: #{tpu_custom_call.1} parent=1 // pred_fallthru
      _
    // Predicated region
    $region46: #{tpu_custom_call.1} parent=1 // pred_check
      _
    $region47: #{tpu_custom_call.1} parent=1 // pred_check_branch
      %563 = sbr.rel (0) target = $region49
    $region48: #{tpu_custom_call.1} parent=1 // pred_region
      %564 = dma.done [#allocation4], 1024
    $region49: #{tpu_custom_call.1} parent=1 // pred_fallthru
      _
    // Predicated region
    $region50: #{tpu_custom_call.1} parent=1 // pred_check
      _
    $region51: #{tpu_custom_call.1} parent=1 // pred_check_branch
      %566 = sbr.rel (0) target = $region53
    $region52: #{tpu_custom_call.1} parent=1 // pred_region
      %567 = dma.done [#allocation10], 16
    $region53: #{tpu_custom_call.1} parent=1 // pred_fallthru
      _
    %568 = vsyncpa [#allocation3], 1
    %569 = vsyncpa [#allocation6], 1
    %570 = vsyncpa [#allocation4], 1
    %571 = vsyncpa [#allocation10], 1

</llo_original>
